<compile_context>
chip_gen: v7x
topology: tpu7x:2x2x1
jax: 0.10.0
libtpu: 0.0.40
codegen_flags: <defaults>
</compile_context>

<pallas_src>
import jax
import jax.numpy as jnp
import numpy as np
from jax.experimental import pallas as pl
from jax.experimental.pallas import tpu as pltpu

# ---------------- sizes (small, consistent with the module config) -----------
B = 2        # batch
T = 8        # question length (padded)
VOCAB = 16   # config['input_size'] -> vocab_size
E = 8        # embedding dim
HID = 32     # LSTM hidden size == question_encoder.output_size
OUT = 2      # config['output_size']
G = 4 * HID  # gate width = 128 lanes (lane-dense)

# slab row layout (all blocks 128 lanes wide)
TBL_OFF = 0                    # rows [0, VOCAB)        : emb @ W_ih + b_lstm
WHH_OFF = VOCAB                # rows [16, 48)          : W_hh
WOUT_OFF = VOCAB + HID         # rows [48, 80)          : W_out padded to 128 lanes
BOUT_OFF = VOCAB + 2 * HID     # row  80                : b_out padded to 128 lanes
SLAB_ROWS = ((BOUT_OFF + 1 + 7) // 8) * 8   # 88 (padded to a sublane multiple)


# ---------------- fused kernel: gather + LSTM recurrence + output Linear -----
def lstm_baseline_kernel(ids_ref, len_ref, slab_ref, out_ref):
    # ids_ref : SMEM int32 [B*T]   (row-major: token (b, t) at b*T + t)
    # len_ref : SMEM int32 [B]
    # slab_ref: VMEM f32  [SLAB_ROWS, 128]  packed weights (see layout above)
    # out_ref : VMEM f32  [B, 128]          lane-padded logits (first OUT lanes valid)

    # Hoisted weight views / casts (bf16 MXU operands, f32 accumulation).
    w_hh = slab_ref[WHH_OFF:WHH_OFF + HID, :].astype(jnp.bfloat16)      # [32, 128]
    w_out = slab_ref[WOUT_OFF:WOUT_OFF + HID, :].astype(jnp.bfloat16)   # [32, 128]
    b_out = slab_ref[BOUT_OFF:BOUT_OFF + 1, :]                          # [1, 128]

    # In-kernel gather of precomputed gate rows (x_t @ W_ih + b) for every
    # (t, b): dynamic single-row loads addressed by SMEM scalars.  These are
    # independent of h, i.e. entirely off the serial recurrence chain.
    gates_x = []
    for t in range(T):
        rows = [slab_ref[pl.ds(ids_ref[b * T + t], 1), :] for b in range(B)]
        gates_x.append(jnp.concatenate(rows, axis=0))                   # [B, 128]

    # Hoisted length broadcast: one [B, HID] int matrix, compared against t
    # inside the loop (no per-step [B,1] re-broadcasts).
    len_mat = jnp.concatenate(
        [jnp.full((1, HID), len_ref[b], jnp.int32) for b in range(B)], axis=0)

    h = jnp.zeros((B, HID), jnp.float32)
    c = jnp.zeros((B, HID), jnp.float32)

    # Short fixed trip count -> fully unrolled recurrence (static slices).
    for t in range(T):
        gates = gates_x[t] + jnp.dot(h.astype(jnp.bfloat16), w_hh,
                                     preferred_element_type=jnp.float32)  # [B, 128]
        # One full-width sigmoid and one full-width tanh per step (layout
        # [i | f | g | o], 32 lanes each); gate math stays f32.
        sg = jax.nn.sigmoid(gates)
        th = jnp.tanh(gates)
        i = sg[:, 0 * HID:1 * HID]
        f = sg[:, 1 * HID:2 * HID]
        g = th[:, 2 * HID:3 * HID]
        o = sg[:, 3 * HID:4 * HID]
        c_new = f * c + i * g
        h_new = o * jnp.tanh(c_new)
        mask = len_mat > t                              # packed-sequence freeze
        h = jnp.where(mask, h_new, h)
        c = jnp.where(mask, c_new, c)

    # Dropout is identity in eval mode; final Linear written exactly once as a
    # lane-dense slab (lanes >= OUT are zero by construction of w_out/b_out).
    y = jnp.dot(h.astype(jnp.bfloat16), w_out,
                preferred_element_type=jnp.float32) + b_out
    out_ref[...] = y.astype(out_ref.dtype)


def lstm_baseline_pallas(ids_flat, lengths, slab):
    return pl.pallas_call(
        lstm_baseline_kernel,
        out_shape=jax.ShapeDtypeStruct((B, G), jnp.float32),
        in_specs=[
            pl.BlockSpec(memory_space=pltpu.MemorySpace.SMEM),   # ids   [B*T]
            pl.BlockSpec(memory_space=pltpu.MemorySpace.SMEM),   # lens  [B]
            pl.BlockSpec(memory_space=pltpu.MemorySpace.VMEM),   # slab  [88,128]
        ],
        out_specs=pl.BlockSpec(memory_space=pltpu.MemorySpace.VMEM),
    )(ids_flat, lengths, slab)


# ---------------- one-time weight packing (cached across forward calls) ------
def build_slab(params):
    # Fold embedding + input projection into one gate table; lane-pad the
    # output head; concatenate everything into a single lane-dense f32 slab.
    table = params["emb"] @ params["w_ih"] + params["b_lstm"]          # [16, 128]
    w_out_pad = jnp.zeros((HID, G), jnp.float32).at[:, :OUT].set(params["w_out"])
    b_out_pad = jnp.zeros((1, G), jnp.float32).at[:, :OUT].set(params["b_out"])
    slab = jnp.concatenate([table, params["w_hh"], w_out_pad, b_out_pad], axis=0)
    pad = SLAB_ROWS - slab.shape[0]
    if pad:
        slab = jnp.concatenate([slab, jnp.zeros((pad, G), jnp.float32)], axis=0)
    return slab                                                        # [88, 128]


# ---------------- full forward -------------------------------------------------
@jax.jit
def lstm_baseline_forward(slab, simulations, questions, lengths):
    del simulations  # LSTMBaseline does not use any kind of visual data
    ids_flat = questions.reshape(-1).astype(jnp.int32)     # [B*T], token (b,t) at b*T+t
    out_pad = lstm_baseline_pallas(ids_flat, lengths.astype(jnp.int32), slab)
    return out_pad[:, :OUT]


# ---------------- pure-JAX reference for a correctness check -----------------
def reference_forward(params, simulations, questions, lengths):
    del simulations
    emb = jnp.take(params["emb"], questions, axis=0)          # [B, T, E]
    h = jnp.zeros((B, HID), jnp.float32)
    c = jnp.zeros((B, HID), jnp.float32)
    for t in range(T):
        x_t = emb[:, t, :]
        gates = x_t @ params["w_ih"] + h @ params["w_hh"] + params["b_lstm"][0]
        i = jax.nn.sigmoid(gates[:, :HID])
        f = jax.nn.sigmoid(gates[:, HID:2 * HID])
        g = jnp.tanh(gates[:, 2 * HID:3 * HID])
        o = jax.nn.sigmoid(gates[:, 3 * HID:])
        c_new = f * c + i * g
        h_new = o * jnp.tanh(c_new)
        mask = (lengths > t)[:, None]
        h = jnp.where(mask, h_new, h)
        c = jnp.where(mask, c_new, c)
    return h @ params["w_out"] + params["b_out"][0]           # dropout: identity


# ---------------- deterministic parameter init --------------------------------
def make_params(key):
    ks = jax.random.split(key, 6)
    sc = 0.1
    return {
        "emb": jax.random.normal(ks[0], (VOCAB, E), jnp.float32),
        "w_ih": sc * jax.random.normal(ks[1], (E, G), jnp.float32),
        "w_hh": sc * jax.random.normal(ks[2], (HID, G), jnp.float32),
        "b_lstm": sc * jax.random.normal(ks[3], (1, G), jnp.float32),
        "w_out": sc * jax.random.normal(ks[4], (HID, OUT), jnp.float32),
        "b_out": sc * jax.random.normal(ks[5], (1, OUT), jnp.float32),
    }


if __name__ == "__main__":
    key = jax.random.PRNGKey(0)
    k_q, k_p = jax.random.split(key, 2)

    simulations = None  # module consumes no frames (SimulationInput.NO_FRAMES)
    questions = jax.random.randint(k_q, (B, T), 0, VOCAB, dtype=jnp.int32)
    lengths = jnp.array([T, 5], dtype=jnp.int32)
    params = make_params(k_p)

    slab = build_slab(params)   # built once, reused across calls

    out = lstm_baseline_forward(slab, simulations, questions, lengths)
    out = jax.block_until_ready(out)

    ref = jax.block_until_ready(
        reference_forward(params, simulations, questions, lengths))
    np.testing.assert_allclose(np.asarray(out), np.asarray(ref),
                               rtol=5e-3, atol=5e-3)
    assert out.shape == (B, OUT)
    print("KERNEL_OK")
</pallas_src>

<mosaic_0001>
module attributes {stable_mosaic.version = 11 : i64} {
  func.func @lstm_baseline_kernel(%arg0: memref<16xi32, #tpu.memory_space<smem>>, %arg1: memref<2xi32, #tpu.memory_space<smem>>, %arg2: memref<88x128xf32, #tpu.memory_space<vmem>>, %arg3: memref<2x128xf32, #tpu.memory_space<vmem>>) attributes {dimension_semantics = [], scalar_prefetch = 0 : i64, scratch_operands = 0 : i64, tpu.core_type = #tpu.core_type<tc>} {
    %c16 = arith.constant 16 : index
    %c0 = arith.constant 0 : index
    %0 = vector.load %arg2[%c16, %c0] : memref<88x128xf32, #tpu.memory_space<vmem>>, vector<32x128xf32>
    %1 = arith.truncf %0 : vector<32x128xf32> to vector<32x128xbf16>
    %c48 = arith.constant 48 : index
    %c0_0 = arith.constant 0 : index
    %2 = vector.load %arg2[%c48, %c0_0] : memref<88x128xf32, #tpu.memory_space<vmem>>, vector<32x128xf32>
    %3 = arith.truncf %2 : vector<32x128xf32> to vector<32x128xbf16>
    %c80 = arith.constant 80 : index
    %c0_1 = arith.constant 0 : index
    %4 = vector.load %arg2[%c80, %c0_1] : memref<88x128xf32, #tpu.memory_space<vmem>>, vector<1x128xf32>
    %c0_2 = arith.constant 0 : index
    %5 = memref.load %arg0[%c0_2] : memref<16xi32, #tpu.memory_space<smem>>
    %6 = arith.index_cast %5 : i32 to index
    %c0_3 = arith.constant 0 : index
    %7 = vector.load %arg2[%6, %c0_3] : memref<88x128xf32, #tpu.memory_space<vmem>>, vector<1x128xf32>
    %c8 = arith.constant 8 : index
    %8 = memref.load %arg0[%c8] : memref<16xi32, #tpu.memory_space<smem>>
    %9 = arith.index_cast %8 : i32 to index
    %c0_4 = arith.constant 0 : index
    %10 = vector.load %arg2[%9, %c0_4] : memref<88x128xf32, #tpu.memory_space<vmem>>, vector<1x128xf32>
    %11 = tpu.concatenate %7, %10 in 0 : vector<1x128xf32>, vector<1x128xf32> -> vector<2x128xf32>
    %c1 = arith.constant 1 : index
    %12 = memref.load %arg0[%c1] : memref<16xi32, #tpu.memory_space<smem>>
    %13 = arith.index_cast %12 : i32 to index
    %c0_5 = arith.constant 0 : index
    %14 = vector.load %arg2[%13, %c0_5] : memref<88x128xf32, #tpu.memory_space<vmem>>, vector<1x128xf32>
    %c9 = arith.constant 9 : index
    %15 = memref.load %arg0[%c9] : memref<16xi32, #tpu.memory_space<smem>>
    %16 = arith.index_cast %15 : i32 to index
    %c0_6 = arith.constant 0 : index
    %17 = vector.load %arg2[%16, %c0_6] : memref<88x128xf32, #tpu.memory_space<vmem>>, vector<1x128xf32>
    %18 = tpu.concatenate %14, %17 in 0 : vector<1x128xf32>, vector<1x128xf32> -> vector<2x128xf32>
    %c2 = arith.constant 2 : index
    %19 = memref.load %arg0[%c2] : memref<16xi32, #tpu.memory_space<smem>>
    %20 = arith.index_cast %19 : i32 to index
    %c0_7 = arith.constant 0 : index
    %21 = vector.load %arg2[%20, %c0_7] : memref<88x128xf32, #tpu.memory_space<vmem>>, vector<1x128xf32>
    %c10 = arith.constant 10 : index
    %22 = memref.load %arg0[%c10] : memref<16xi32, #tpu.memory_space<smem>>
    %23 = arith.index_cast %22 : i32 to index
    %c0_8 = arith.constant 0 : index
    %24 = vector.load %arg2[%23, %c0_8] : memref<88x128xf32, #tpu.memory_space<vmem>>, vector<1x128xf32>
    %25 = tpu.concatenate %21, %24 in 0 : vector<1x128xf32>, vector<1x128xf32> -> vector<2x128xf32>
    %c3 = arith.constant 3 : index
    %26 = memref.load %arg0[%c3] : memref<16xi32, #tpu.memory_space<smem>>
    %27 = arith.index_cast %26 : i32 to index
    %c0_9 = arith.constant 0 : index
    %28 = vector.load %arg2[%27, %c0_9] : memref<88x128xf32, #tpu.memory_space<vmem>>, vector<1x128xf32>
    %c11 = arith.constant 11 : index
    %29 = memref.load %arg0[%c11] : memref<16xi32, #tpu.memory_space<smem>>
    %30 = arith.index_cast %29 : i32 to index
    %c0_10 = arith.constant 0 : index
    %31 = vector.load %arg2[%30, %c0_10] : memref<88x128xf32, #tpu.memory_space<vmem>>, vector<1x128xf32>
    %32 = tpu.concatenate %28, %31 in 0 : vector<1x128xf32>, vector<1x128xf32> -> vector<2x128xf32>
    %c4 = arith.constant 4 : index
    %33 = memref.load %arg0[%c4] : memref<16xi32, #tpu.memory_space<smem>>
    %34 = arith.index_cast %33 : i32 to index
    %c0_11 = arith.constant 0 : index
    %35 = vector.load %arg2[%34, %c0_11] : memref<88x128xf32, #tpu.memory_space<vmem>>, vector<1x128xf32>
    %c12 = arith.constant 12 : index
    %36 = memref.load %arg0[%c12] : memref<16xi32, #tpu.memory_space<smem>>
    %37 = arith.index_cast %36 : i32 to index
    %c0_12 = arith.constant 0 : index
    %38 = vector.load %arg2[%37, %c0_12] : memref<88x128xf32, #tpu.memory_space<vmem>>, vector<1x128xf32>
    %39 = tpu.concatenate %35, %38 in 0 : vector<1x128xf32>, vector<1x128xf32> -> vector<2x128xf32>
    %c5 = arith.constant 5 : index
    %40 = memref.load %arg0[%c5] : memref<16xi32, #tpu.memory_space<smem>>
    %41 = arith.index_cast %40 : i32 to index
    %c0_13 = arith.constant 0 : index
    %42 = vector.load %arg2[%41, %c0_13] : memref<88x128xf32, #tpu.memory_space<vmem>>, vector<1x128xf32>
    %c13 = arith.constant 13 : index
    %43 = memref.load %arg0[%c13] : memref<16xi32, #tpu.memory_space<smem>>
    %44 = arith.index_cast %43 : i32 to index
    %c0_14 = arith.constant 0 : index
    %45 = vector.load %arg2[%44, %c0_14] : memref<88x128xf32, #tpu.memory_space<vmem>>, vector<1x128xf32>
    %46 = tpu.concatenate %42, %45 in 0 : vector<1x128xf32>, vector<1x128xf32> -> vector<2x128xf32>
    %c6 = arith.constant 6 : index
    %47 = memref.load %arg0[%c6] : memref<16xi32, #tpu.memory_space<smem>>
    %48 = arith.index_cast %47 : i32 to index
    %c0_15 = arith.constant 0 : index
    %49 = vector.load %arg2[%48, %c0_15] : memref<88x128xf32, #tpu.memory_space<vmem>>, vector<1x128xf32>
    %c14 = arith.constant 14 : index
    %50 = memref.load %arg0[%c14] : memref<16xi32, #tpu.memory_space<smem>>
    %51 = arith.index_cast %50 : i32 to index
    %c0_16 = arith.constant 0 : index
    %52 = vector.load %arg2[%51, %c0_16] : memref<88x128xf32, #tpu.memory_space<vmem>>, vector<1x128xf32>
    %53 = tpu.concatenate %49, %52 in 0 : vector<1x128xf32>, vector<1x128xf32> -> vector<2x128xf32>
    %c7 = arith.constant 7 : index
    %54 = memref.load %arg0[%c7] : memref<16xi32, #tpu.memory_space<smem>>
    %55 = arith.index_cast %54 : i32 to index
    %c0_17 = arith.constant 0 : index
    %56 = vector.load %arg2[%55, %c0_17] : memref<88x128xf32, #tpu.memory_space<vmem>>, vector<1x128xf32>
    %c15 = arith.constant 15 : index
    %57 = memref.load %arg0[%c15] : memref<16xi32, #tpu.memory_space<smem>>
    %58 = arith.index_cast %57 : i32 to index
    %c0_18 = arith.constant 0 : index
    %59 = vector.load %arg2[%58, %c0_18] : memref<88x128xf32, #tpu.memory_space<vmem>>, vector<1x128xf32>
    %60 = tpu.concatenate %56, %59 in 0 : vector<1x128xf32>, vector<1x128xf32> -> vector<2x128xf32>
    %c0_19 = arith.constant 0 : index
    %61 = memref.load %arg1[%c0_19] : memref<2xi32, #tpu.memory_space<smem>>
    %62 = vector.broadcast %61 : i32 to vector<1x32xi32>
    %c1_20 = arith.constant 1 : index
    %63 = memref.load %arg1[%c1_20] : memref<2xi32, #tpu.memory_space<smem>>
    %64 = vector.broadcast %63 : i32 to vector<1x32xi32>
    %65 = tpu.concatenate %62, %64 in 0 : vector<1x32xi32>, vector<1x32xi32> -> vector<2x32xi32>
    %cst = arith.constant 0.000000e+00 : f32
    %66 = vector.broadcast %cst : f32 to vector<2x32xf32>
    %cst_21 = arith.constant 0.000000e+00 : f32
    %67 = vector.broadcast %cst_21 : f32 to vector<2x32xf32>
    %68 = arith.truncf %66 : vector<2x32xf32> to vector<2x32xbf16>
    %cst_22 = arith.constant dense<0.000000e+00> : vector<2x128xf32>
    %69 = tpu.matmul %68, %1, %cst_22 {dimension_numbers = #tpu.dot_dimension_numbers<[1], [0], [0], [1], [0, 0, 1, 1], [], []>} : vector<2x32xbf16>, vector<32x128xbf16>, vector<2x128xf32> -> vector<2x128xf32>
    %70 = arith.addf %11, %69 : vector<2x128xf32>
    %71 = arith.negf %70 : vector<2x128xf32>
    %72 = math.exp %71 : vector<2x128xf32>
    %cst_23 = arith.constant 1.000000e+00 : f32
    %73 = vector.broadcast %cst_23 : f32 to vector<2x128xf32>
    %74 = arith.addf %73, %72 : vector<2x128xf32>
    %75 = arith.divf %73, %74 : vector<2x128xf32>
    %76 = math.tanh %70 : vector<2x128xf32>
    %77 = vector.extract_strided_slice %75 {offsets = [0, 0], sizes = [2, 32], strides = [1, 1]} : vector<2x128xf32> to vector<2x32xf32>
    %78 = vector.extract_strided_slice %75 {offsets = [0, 32], sizes = [2, 32], strides = [1, 1]} : vector<2x128xf32> to vector<2x32xf32>
    %79 = vector.extract_strided_slice %76 {offsets = [0, 64], sizes = [2, 32], strides = [1, 1]} : vector<2x128xf32> to vector<2x32xf32>
    %80 = vector.extract_strided_slice %75 {offsets = [0, 96], sizes = [2, 32], strides = [1, 1]} : vector<2x128xf32> to vector<2x32xf32>
    %81 = arith.mulf %78, %67 : vector<2x32xf32>
    %82 = arith.mulf %77, %79 : vector<2x32xf32>
    %83 = arith.addf %81, %82 : vector<2x32xf32>
    %84 = math.tanh %83 : vector<2x32xf32>
    %85 = arith.mulf %80, %84 : vector<2x32xf32>
    %c0_i32 = arith.constant 0 : i32
    %86 = vector.broadcast %c0_i32 : i32 to vector<2x32xi32>
    %87 = arith.cmpi sgt, %65, %86 : vector<2x32xi32>
    %88 = arith.select %87, %85, %66 : vector<2x32xi1>, vector<2x32xf32>
    %89 = arith.select %87, %83, %67 : vector<2x32xi1>, vector<2x32xf32>
    %90 = arith.truncf %88 : vector<2x32xf32> to vector<2x32xbf16>
    %cst_24 = arith.constant dense<0.000000e+00> : vector<2x128xf32>
    %91 = tpu.matmul %90, %1, %cst_24 {dimension_numbers = #tpu.dot_dimension_numbers<[1], [0], [0], [1], [0, 0, 1, 1], [], []>} : vector<2x32xbf16>, vector<32x128xbf16>, vector<2x128xf32> -> vector<2x128xf32>
    %92 = arith.addf %18, %91 : vector<2x128xf32>
    %93 = arith.negf %92 : vector<2x128xf32>
    %94 = math.exp %93 : vector<2x128xf32>
    %cst_25 = arith.constant 1.000000e+00 : f32
    %95 = vector.broadcast %cst_25 : f32 to vector<2x128xf32>
    %96 = arith.addf %95, %94 : vector<2x128xf32>
    %97 = arith.divf %95, %96 : vector<2x128xf32>
    %98 = math.tanh %92 : vector<2x128xf32>
    %99 = vector.extract_strided_slice %97 {offsets = [0, 0], sizes = [2, 32], strides = [1, 1]} : vector<2x128xf32> to vector<2x32xf32>
    %100 = vector.extract_strided_slice %97 {offsets = [0, 32], sizes = [2, 32], strides = [1, 1]} : vector<2x128xf32> to vector<2x32xf32>
    %101 = vector.extract_strided_slice %98 {offsets = [0, 64], sizes = [2, 32], strides = [1, 1]} : vector<2x128xf32> to vector<2x32xf32>
    %102 = vector.extract_strided_slice %97 {offsets = [0, 96], sizes = [2, 32], strides = [1, 1]} : vector<2x128xf32> to vector<2x32xf32>
    %103 = arith.mulf %100, %89 : vector<2x32xf32>
    %104 = arith.mulf %99, %101 : vector<2x32xf32>
    %105 = arith.addf %103, %104 : vector<2x32xf32>
    %106 = math.tanh %105 : vector<2x32xf32>
    %107 = arith.mulf %102, %106 : vector<2x32xf32>
    %c1_i32 = arith.constant 1 : i32
    %108 = vector.broadcast %c1_i32 : i32 to vector<2x32xi32>
    %109 = arith.cmpi sgt, %65, %108 : vector<2x32xi32>
    %110 = arith.select %109, %107, %88 : vector<2x32xi1>, vector<2x32xf32>
    %111 = arith.select %109, %105, %89 : vector<2x32xi1>, vector<2x32xf32>
    %112 = arith.truncf %110 : vector<2x32xf32> to vector<2x32xbf16>
    %cst_26 = arith.constant dense<0.000000e+00> : vector<2x128xf32>
    %113 = tpu.matmul %112, %1, %cst_26 {dimension_numbers = #tpu.dot_dimension_numbers<[1], [0], [0], [1], [0, 0, 1, 1], [], []>} : vector<2x32xbf16>, vector<32x128xbf16>, vector<2x128xf32> -> vector<2x128xf32>
    %114 = arith.addf %25, %113 : vector<2x128xf32>
    %115 = arith.negf %114 : vector<2x128xf32>
    %116 = math.exp %115 : vector<2x128xf32>
    %cst_27 = arith.constant 1.000000e+00 : f32
    %117 = vector.broadcast %cst_27 : f32 to vector<2x128xf32>
    %118 = arith.addf %117, %116 : vector<2x128xf32>
    %119 = arith.divf %117, %118 : vector<2x128xf32>
    %120 = math.tanh %114 : vector<2x128xf32>
    %121 = vector.extract_strided_slice %119 {offsets = [0, 0], sizes = [2, 32], strides = [1, 1]} : vector<2x128xf32> to vector<2x32xf32>
    %122 = vector.extract_strided_slice %119 {offsets = [0, 32], sizes = [2, 32], strides = [1, 1]} : vector<2x128xf32> to vector<2x32xf32>
    %123 = vector.extract_strided_slice %120 {offsets = [0, 64], sizes = [2, 32], strides = [1, 1]} : vector<2x128xf32> to vector<2x32xf32>
    %124 = vector.extract_strided_slice %119 {offsets = [0, 96], sizes = [2, 32], strides = [1, 1]} : vector<2x128xf32> to vector<2x32xf32>
    %125 = arith.mulf %122, %111 : vector<2x32xf32>
    %126 = arith.mulf %121, %123 : vector<2x32xf32>
    %127 = arith.addf %125, %126 : vector<2x32xf32>
    %128 = math.tanh %127 : vector<2x32xf32>
    %129 = arith.mulf %124, %128 : vector<2x32xf32>
    %c2_i32 = arith.constant 2 : i32
    %130 = vector.broadcast %c2_i32 : i32 to vector<2x32xi32>
    %131 = arith.cmpi sgt, %65, %130 : vector<2x32xi32>
    %132 = arith.select %131, %129, %110 : vector<2x32xi1>, vector<2x32xf32>
    %133 = arith.select %131, %127, %111 : vector<2x32xi1>, vector<2x32xf32>
    %134 = arith.truncf %132 : vector<2x32xf32> to vector<2x32xbf16>
    %cst_28 = arith.constant dense<0.000000e+00> : vector<2x128xf32>
    %135 = tpu.matmul %134, %1, %cst_28 {dimension_numbers = #tpu.dot_dimension_numbers<[1], [0], [0], [1], [0, 0, 1, 1], [], []>} : vector<2x32xbf16>, vector<32x128xbf16>, vector<2x128xf32> -> vector<2x128xf32>
    %136 = arith.addf %32, %135 : vector<2x128xf32>
    %137 = arith.negf %136 : vector<2x128xf32>
    %138 = math.exp %137 : vector<2x128xf32>
    %cst_29 = arith.constant 1.000000e+00 : f32
    %139 = vector.broadcast %cst_29 : f32 to vector<2x128xf32>
    %140 = arith.addf %139, %138 : vector<2x128xf32>
    %141 = arith.divf %139, %140 : vector<2x128xf32>
    %142 = math.tanh %136 : vector<2x128xf32>
    %143 = vector.extract_strided_slice %141 {offsets = [0, 0], sizes = [2, 32], strides = [1, 1]} : vector<2x128xf32> to vector<2x32xf32>
    %144 = vector.extract_strided_slice %141 {offsets = [0, 32], sizes = [2, 32], strides = [1, 1]} : vector<2x128xf32> to vector<2x32xf32>
    %145 = vector.extract_strided_slice %142 {offsets = [0, 64], sizes = [2, 32], strides = [1, 1]} : vector<2x128xf32> to vector<2x32xf32>
    %146 = vector.extract_strided_slice %141 {offsets = [0, 96], sizes = [2, 32], strides = [1, 1]} : vector<2x128xf32> to vector<2x32xf32>
    %147 = arith.mulf %144, %133 : vector<2x32xf32>
    %148 = arith.mulf %143, %145 : vector<2x32xf32>
    %149 = arith.addf %147, %148 : vector<2x32xf32>
    %150 = math.tanh %149 : vector<2x32xf32>
    %151 = arith.mulf %146, %150 : vector<2x32xf32>
    %c3_i32 = arith.constant 3 : i32
    %152 = vector.broadcast %c3_i32 : i32 to vector<2x32xi32>
    %153 = arith.cmpi sgt, %65, %152 : vector<2x32xi32>
    %154 = arith.select %153, %151, %132 : vector<2x32xi1>, vector<2x32xf32>
    %155 = arith.select %153, %149, %133 : vector<2x32xi1>, vector<2x32xf32>
    %156 = arith.truncf %154 : vector<2x32xf32> to vector<2x32xbf16>
    %cst_30 = arith.constant dense<0.000000e+00> : vector<2x128xf32>
    %157 = tpu.matmul %156, %1, %cst_30 {dimension_numbers = #tpu.dot_dimension_numbers<[1], [0], [0], [1], [0, 0, 1, 1], [], []>} : vector<2x32xbf16>, vector<32x128xbf16>, vector<2x128xf32> -> vector<2x128xf32>
    %158 = arith.addf %39, %157 : vector<2x128xf32>
    %159 = arith.negf %158 : vector<2x128xf32>
    %160 = math.exp %159 : vector<2x128xf32>
    %cst_31 = arith.constant 1.000000e+00 : f32
    %161 = vector.broadcast %cst_31 : f32 to vector<2x128xf32>
    %162 = arith.addf %161, %160 : vector<2x128xf32>
    %163 = arith.divf %161, %162 : vector<2x128xf32>
    %164 = math.tanh %158 : vector<2x128xf32>
    %165 = vector.extract_strided_slice %163 {offsets = [0, 0], sizes = [2, 32], strides = [1, 1]} : vector<2x128xf32> to vector<2x32xf32>
    %166 = vector.extract_strided_slice %163 {offsets = [0, 32], sizes = [2, 32], strides = [1, 1]} : vector<2x128xf32> to vector<2x32xf32>
    %167 = vector.extract_strided_slice %164 {offsets = [0, 64], sizes = [2, 32], strides = [1, 1]} : vector<2x128xf32> to vector<2x32xf32>
    %168 = vector.extract_strided_slice %163 {offsets = [0, 96], sizes = [2, 32], strides = [1, 1]} : vector<2x128xf32> to vector<2x32xf32>
    %169 = arith.mulf %166, %155 : vector<2x32xf32>
    %170 = arith.mulf %165, %167 : vector<2x32xf32>
    %171 = arith.addf %169, %170 : vector<2x32xf32>
    %172 = math.tanh %171 : vector<2x32xf32>
    %173 = arith.mulf %168, %172 : vector<2x32xf32>
    %c4_i32 = arith.constant 4 : i32
    %174 = vector.broadcast %c4_i32 : i32 to vector<2x32xi32>
    %175 = arith.cmpi sgt, %65, %174 : vector<2x32xi32>
    %176 = arith.select %175, %173, %154 : vector<2x32xi1>, vector<2x32xf32>
    %177 = arith.select %175, %171, %155 : vector<2x32xi1>, vector<2x32xf32>
    %178 = arith.truncf %176 : vector<2x32xf32> to vector<2x32xbf16>
    %cst_32 = arith.constant dense<0.000000e+00> : vector<2x128xf32>
    %179 = tpu.matmul %178, %1, %cst_32 {dimension_numbers = #tpu.dot_dimension_numbers<[1], [0], [0], [1], [0, 0, 1, 1], [], []>} : vector<2x32xbf16>, vector<32x128xbf16>, vector<2x128xf32> -> vector<2x128xf32>
    %180 = arith.addf %46, %179 : vector<2x128xf32>
    %181 = arith.negf %180 : vector<2x128xf32>
    %182 = math.exp %181 : vector<2x128xf32>
    %cst_33 = arith.constant 1.000000e+00 : f32
    %183 = vector.broadcast %cst_33 : f32 to vector<2x128xf32>
    %184 = arith.addf %183, %182 : vector<2x128xf32>
    %185 = arith.divf %183, %184 : vector<2x128xf32>
    %186 = math.tanh %180 : vector<2x128xf32>
    %187 = vector.extract_strided_slice %185 {offsets = [0, 0], sizes = [2, 32], strides = [1, 1]} : vector<2x128xf32> to vector<2x32xf32>
    %188 = vector.extract_strided_slice %185 {offsets = [0, 32], sizes = [2, 32], strides = [1, 1]} : vector<2x128xf32> to vector<2x32xf32>
    %189 = vector.extract_strided_slice %186 {offsets = [0, 64], sizes = [2, 32], strides = [1, 1]} : vector<2x128xf32> to vector<2x32xf32>
    %190 = vector.extract_strided_slice %185 {offsets = [0, 96], sizes = [2, 32], strides = [1, 1]} : vector<2x128xf32> to vector<2x32xf32>
    %191 = arith.mulf %188, %177 : vector<2x32xf32>
    %192 = arith.mulf %187, %189 : vector<2x32xf32>
    %193 = arith.addf %191, %192 : vector<2x32xf32>
    %194 = math.tanh %193 : vector<2x32xf32>
    %195 = arith.mulf %190, %194 : vector<2x32xf32>
    %c5_i32 = arith.constant 5 : i32
    %196 = vector.broadcast %c5_i32 : i32 to vector<2x32xi32>
    %197 = arith.cmpi sgt, %65, %196 : vector<2x32xi32>
    %198 = arith.select %197, %195, %176 : vector<2x32xi1>, vector<2x32xf32>
    %199 = arith.select %197, %193, %177 : vector<2x32xi1>, vector<2x32xf32>
    %200 = arith.truncf %198 : vector<2x32xf32> to vector<2x32xbf16>
    %cst_34 = arith.constant dense<0.000000e+00> : vector<2x128xf32>
    %201 = tpu.matmul %200, %1, %cst_34 {dimension_numbers = #tpu.dot_dimension_numbers<[1], [0], [0], [1], [0, 0, 1, 1], [], []>} : vector<2x32xbf16>, vector<32x128xbf16>, vector<2x128xf32> -> vector<2x128xf32>
    %202 = arith.addf %53, %201 : vector<2x128xf32>
    %203 = arith.negf %202 : vector<2x128xf32>
    %204 = math.exp %203 : vector<2x128xf32>
    %cst_35 = arith.constant 1.000000e+00 : f32
    %205 = vector.broadcast %cst_35 : f32 to vector<2x128xf32>
    %206 = arith.addf %205, %204 : vector<2x128xf32>
    %207 = arith.divf %205, %206 : vector<2x128xf32>
    %208 = math.tanh %202 : vector<2x128xf32>
    %209 = vector.extract_strided_slice %207 {offsets = [0, 0], sizes = [2, 32], strides = [1, 1]} : vector<2x128xf32> to vector<2x32xf32>
    %210 = vector.extract_strided_slice %207 {offsets = [0, 32], sizes = [2, 32], strides = [1, 1]} : vector<2x128xf32> to vector<2x32xf32>
    %211 = vector.extract_strided_slice %208 {offsets = [0, 64], sizes = [2, 32], strides = [1, 1]} : vector<2x128xf32> to vector<2x32xf32>
    %212 = vector.extract_strided_slice %207 {offsets = [0, 96], sizes = [2, 32], strides = [1, 1]} : vector<2x128xf32> to vector<2x32xf32>
    %213 = arith.mulf %210, %199 : vector<2x32xf32>
    %214 = arith.mulf %209, %211 : vector<2x32xf32>
    %215 = arith.addf %213, %214 : vector<2x32xf32>
    %216 = math.tanh %215 : vector<2x32xf32>
    %217 = arith.mulf %212, %216 : vector<2x32xf32>
    %c6_i32 = arith.constant 6 : i32
    %218 = vector.broadcast %c6_i32 : i32 to vector<2x32xi32>
    %219 = arith.cmpi sgt, %65, %218 : vector<2x32xi32>
    %220 = arith.select %219, %217, %198 : vector<2x32xi1>, vector<2x32xf32>
    %221 = arith.select %219, %215, %199 : vector<2x32xi1>, vector<2x32xf32>
    %222 = arith.truncf %220 : vector<2x32xf32> to vector<2x32xbf16>
    %cst_36 = arith.constant dense<0.000000e+00> : vector<2x128xf32>
    %223 = tpu.matmul %222, %1, %cst_36 {dimension_numbers = #tpu.dot_dimension_numbers<[1], [0], [0], [1], [0, 0, 1, 1], [], []>} : vector<2x32xbf16>, vector<32x128xbf16>, vector<2x128xf32> -> vector<2x128xf32>
    %224 = arith.addf %60, %223 : vector<2x128xf32>
    %225 = arith.negf %224 : vector<2x128xf32>
    %226 = math.exp %225 : vector<2x128xf32>
    %cst_37 = arith.constant 1.000000e+00 : f32
    %227 = vector.broadcast %cst_37 : f32 to vector<2x128xf32>
    %228 = arith.addf %227, %226 : vector<2x128xf32>
    %229 = arith.divf %227, %228 : vector<2x128xf32>
    %230 = math.tanh %224 : vector<2x128xf32>
    %231 = vector.extract_strided_slice %229 {offsets = [0, 0], sizes = [2, 32], strides = [1, 1]} : vector<2x128xf32> to vector<2x32xf32>
    %232 = vector.extract_strided_slice %229 {offsets = [0, 32], sizes = [2, 32], strides = [1, 1]} : vector<2x128xf32> to vector<2x32xf32>
    %233 = vector.extract_strided_slice %230 {offsets = [0, 64], sizes = [2, 32], strides = [1, 1]} : vector<2x128xf32> to vector<2x32xf32>
    %234 = vector.extract_strided_slice %229 {offsets = [0, 96], sizes = [2, 32], strides = [1, 1]} : vector<2x128xf32> to vector<2x32xf32>
    %235 = arith.mulf %232, %221 : vector<2x32xf32>
    %236 = arith.mulf %231, %233 : vector<2x32xf32>
    %237 = arith.addf %235, %236 : vector<2x32xf32>
    %238 = math.tanh %237 : vector<2x32xf32>
    %239 = arith.mulf %234, %238 : vector<2x32xf32>
    %c7_i32 = arith.constant 7 : i32
    %240 = vector.broadcast %c7_i32 : i32 to vector<2x32xi32>
    %241 = arith.cmpi sgt, %65, %240 : vector<2x32xi32>
    %242 = arith.select %241, %239, %220 : vector<2x32xi1>, vector<2x32xf32>
    %243 = arith.truncf %242 : vector<2x32xf32> to vector<2x32xbf16>
    %cst_38 = arith.constant dense<0.000000e+00> : vector<2x128xf32>
    %244 = tpu.matmul %243, %3, %cst_38 {dimension_numbers = #tpu.dot_dimension_numbers<[1], [0], [0], [1], [0, 0, 1, 1], [], []>} : vector<2x32xbf16>, vector<32x128xbf16>, vector<2x128xf32> -> vector<2x128xf32>
    %245 = vector.broadcast %4 : vector<1x128xf32> to vector<2x128xf32>
    %246 = arith.addf %244, %245 : vector<2x128xf32>
    %c0_39 = arith.constant 0 : index
    %c0_40 = arith.constant 0 : index
    %247 = vector.load %arg3[%c0_39, %c0_40] : memref<2x128xf32, #tpu.memory_space<vmem>>, vector<2x128xf32>
    tpu.vector_store %arg3[%c0_39, %c0_40], %246 {strides = array<i32>} : memref<2x128xf32, #tpu.memory_space<vmem>>, vector<2x128xf32>,
    return
  }
}

</mosaic_0001>

<llo_original>
// kernel: lstm_baseline_forward.1
$region0: #{lstm_baseline_forward.1}
  #allocation0 [shape = 'u32[]', space=smem, size = 0x4, offset = 0x4, fixed_abs, tag = 'smem constant byte address 0x4 - core index']
  #allocation1 [shape = 'u32[144,128]{1,0:T(1,128)}', space=vmem, size = 0x12000, scoped, tag = 'internal scratch']
  %s0 = inlined_call_operand.vmem [shape: s32[16], index: 0, kind: input, shape index: {}]
  %s1 = inlined_call_operand.vmem [shape: s32[2], index: 1, kind: input, shape index: {}]
  %s2 = inlined_call_operand.hbm [shape: f32[88,128], index: 2, kind: input, shape index: {}]
  %s3 = inlined_call_operand.hbm [shape: f32[2,128], index: 3, kind: output, shape index: {}]
  %s4 = sld [smem:[#allocation0]]
  $region34: #{lstm_baseline_forward.1} parent=0
    _
  %s6 = ssub.s32 1, %s4
  %s7 = scalar_select 0, %s6, %s4
  $region1: #{lstm_baseline_forward.1} parent=0
    #allocation2 [shape = 'u8[512]{0}', space=smem, size = 0x200, scoped, tag = 'input window, operand 0, single buffered']
    #allocation3 [shape = 's32[1]{0}', space=sflag, size = 0x4, scoped, tag = 'scoped memory for lstm_baseline_forward.1']
    #allocation4 [shape = 's32[1]{0}', space=sflag, size = 0x4, scoped, tag = 'scoped memory for lstm_baseline_forward.1']
    #allocation5 [shape = 's32[1]{0}', space=sflag, size = 0x4, scoped, tag = 'scoped memory for lstm_baseline_forward.1']
    #allocation6 [shape = 'u8[512]{0}', space=smem, size = 0x200, scoped, tag = 'input window, operand 1, single buffered']
    #allocation7 [shape = 's32[1]{0}', space=sflag, size = 0x4, scoped, tag = 'scoped memory for lstm_baseline_forward.1']
    #allocation8 [shape = 'u8[45056]{0}', space=vmem, size = 0xb000, scoped, tag = 'input window, operand 2, single buffered']
    #allocation9 [shape = 'u8[1024]{0}', space=vmem, size = 0x400, scoped, tag = 'output window, operand 0, single buffered']
    %8 = vsyncpa [#allocation5], 0
    %9 = vsyncpa [#allocation7], 0
    %10 = vsyncpa [#allocation3], 0
    %11 = vsyncpa [#allocation4], 0
    // Predicated region
    $region2: #{lstm_baseline_forward.1} parent=1 // pred_check
      _
    $region3: #{lstm_baseline_forward.1} parent=1 // pred_check_branch
      %13 = sbr.rel (0) target = $region5
    $region4: #{lstm_baseline_forward.1} parent=1 // pred_region
      %s15 = ssub.s32 16, 16
      %16 = vsyncadd [#allocation5], %s15
      %s18 = sshll.u32 %s0, 4
      %s19 = int_to_ptr.vmem [resolvable:$true] %s18
      %21 = dma.vmem_to_smem %s19, 16, [#allocation2], [#allocation5]
    $region5: #{lstm_baseline_forward.1} parent=1 // pred_fallthru
      _
    // Predicated region
    $region6: #{lstm_baseline_forward.1} parent=1 // pred_check
      _
    $region7: #{lstm_baseline_forward.1} parent=1 // pred_check_branch
      %23 = sbr.rel (0) target = $region9
    $region8: #{lstm_baseline_forward.1} parent=1 // pred_region
      %s25 = ssub.s32 16, 16
      %26 = vsyncadd [#allocation7], %s25
      %s28 = sshll.u32 %s1, 4
      %s29 = int_to_ptr.vmem [resolvable:$true] %s28
      %31 = dma.vmem_to_smem %s29, 16, [#allocation6], [#allocation7]
    $region9: #{lstm_baseline_forward.1} parent=1 // pred_fallthru
      _
    // Predicated region
    $region10: #{lstm_baseline_forward.1} parent=1 // pred_check
      _
    $region11: #{lstm_baseline_forward.1} parent=1 // pred_check_branch
      %33 = sbr.rel (0) target = $region13
    $region12: #{lstm_baseline_forward.1} parent=1 // pred_region
      %s35 = ssub.s32 1408, 1408
      %36 = vsyncadd [#allocation3], %s35
      %s37 = sshll.u32 [#allocation8], 4
      %s38 = int_to_ptr.vmem [resolvable:$true] %s37
      %43 = dma.hbm_to_vmem [thread:$0]  %s2, 1408, %s38, [#allocation3], 128, 128, 8
    $region13: #{lstm_baseline_forward.1} parent=1 // pred_fallthru
      _
    // Predicated region
    $region14: #{lstm_baseline_forward.1} parent=1 // pred_check
      _
    $region15: #{lstm_baseline_forward.1} parent=1 // pred_check_branch
      %45 = sbr.rel (0) target = $region17
    $region16: #{lstm_baseline_forward.1} parent=1 // pred_region
      %46 = dma.done [#allocation5], 16
    $region17: #{lstm_baseline_forward.1} parent=1 // pred_fallthru
      _
    // Predicated region
    $region18: #{lstm_baseline_forward.1} parent=1 // pred_check
      _
    $region19: #{lstm_baseline_forward.1} parent=1 // pred_check_branch
      %48 = sbr.rel (0) target = $region21
    $region20: #{lstm_baseline_forward.1} parent=1 // pred_region
      %49 = dma.done [#allocation7], 16
    $region21: #{lstm_baseline_forward.1} parent=1 // pred_fallthru
      _
    // Predicated region
    $region22: #{lstm_baseline_forward.1} parent=1 // pred_check
      _
    $region23: #{lstm_baseline_forward.1} parent=1 // pred_check_branch
      %51 = sbr.rel (0) target = $region25
    $region24: #{lstm_baseline_forward.1} parent=1 // pred_region
      %52 = dma.done [#allocation3], 1408
    $region25: #{lstm_baseline_forward.1} parent=1 // pred_fallthru
      _
    %53 = sfence
    %v55 = vld [vmem:[#allocation8 + $0x10] sm:$0xff]
    %v56 = vld [vmem:[#allocation8 + $0x18] sm:$0xff]
    %v57 = vld [vmem:[#allocation8 + $0x20] sm:$0xff]
    %v58 = vld [vmem:[#allocation8 + $0x28] sm:$0xff]
    %v59 = vpack.c.bf16 %v56, %v55
    %v60 = vpack.c.bf16 %v58, %v57
    %v61 = vld [vmem:[#allocation8 + $0x30] sm:$0xff]
    %v62 = vld [vmem:[#allocation8 + $0x38] sm:$0xff]
    %v63 = vld [vmem:[#allocation8 + $0x40] sm:$0xff]
    %v64 = vld [vmem:[#allocation8 + $0x48] sm:$0xff]
    %v65 = vpack.c.bf16 %v62, %v61
    %v66 = vpack.c.bf16 %v64, %v63
    %v67 = vld [vmem:[#allocation8 + $0x50] sm:$0x1]
    %s68 = sld [smem:[#allocation2]]
    %s69 = scalar_lea.vmem [#allocation8], %s68
    %v70 = vld [vmem:[%s69] sm:$0x1]
    %s71 = sld [smem:[#allocation2 + $0x8]]
    %s72 = scalar_lea.vmem [#allocation8], %s71
    %v73 = vld [vmem:[%s72] sm:$0x1]
    %v75 = vrot.slane %v73, 7
    %vm77 = vcmask 1040384
    %v78 = vsel %vm77, %v70, %v75
    %s79 = sld [smem:[#allocation2 + $0x1]]
    %s80 = scalar_lea.vmem [#allocation8], %s79
    %v81 = vld [vmem:[%s80] sm:$0x1]
    %s82 = sld [smem:[#allocation2 + $0x9]]
    %s83 = scalar_lea.vmem [#allocation8], %s82
    %v84 = vld [vmem:[%s83] sm:$0x1]
    %v86 = vrot.slane %v84, 7
    %v88 = vsel %vm77, %v81, %v86
    %s89 = sld [smem:[#allocation2 + $0x2]]
    %s90 = scalar_lea.vmem [#allocation8], %s89
    %v91 = vld [vmem:[%s90] sm:$0x1]
    %s92 = sld [smem:[#allocation2 + $0xa]]
    %s93 = scalar_lea.vmem [#allocation8], %s92
    %v94 = vld [vmem:[%s93] sm:$0x1]
    %v96 = vrot.slane %v94, 7
    %v98 = vsel %vm77, %v91, %v96
    %s99 = sld [smem:[#allocation2 + $0x3]]
    %s100 = scalar_lea.vmem [#allocation8], %s99
    %v101 = vld [vmem:[%s100] sm:$0x1]
    %s102 = sld [smem:[#allocation2 + $0xb]]
    %s103 = scalar_lea.vmem [#allocation8], %s102
    %v104 = vld [vmem:[%s103] sm:$0x1]
    %v106 = vrot.slane %v104, 7
    %v108 = vsel %vm77, %v101, %v106
    %s109 = sld [smem:[#allocation2 + $0x4]]
    %s110 = scalar_lea.vmem [#allocation8], %s109
    %v111 = vld [vmem:[%s110] sm:$0x1]
    %s112 = sld [smem:[#allocation2 + $0xc]]
    %s113 = scalar_lea.vmem [#allocation8], %s112
    %v114 = vld [vmem:[%s113] sm:$0x1]
    %v116 = vrot.slane %v114, 7
    %v118 = vsel %vm77, %v111, %v116
    %s119 = sld [smem:[#allocation2 + $0x5]]
    %s120 = scalar_lea.vmem [#allocation8], %s119
    %v121 = vld [vmem:[%s120] sm:$0x1]
    %s122 = sld [smem:[#allocation2 + $0xd]]
    %s123 = scalar_lea.vmem [#allocation8], %s122
    %v124 = vld [vmem:[%s123] sm:$0x1]
    %v126 = vrot.slane %v124, 7
    %v128 = vsel %vm77, %v121, %v126
    %s129 = sld [smem:[#allocation2 + $0x6]]
    %s130 = scalar_lea.vmem [#allocation8], %s129
    %v131 = vld [vmem:[%s130] sm:$0x1]
    %s132 = sld [smem:[#allocation2 + $0xe]]
    %s133 = scalar_lea.vmem [#allocation8], %s132
    %v134 = vld [vmem:[%s133] sm:$0x1]
    %v136 = vrot.slane %v134, 7
    %v138 = vsel %vm77, %v131, %v136
    %s139 = sld [smem:[#allocation2 + $0x7]]
    %s140 = scalar_lea.vmem [#allocation8], %s139
    %v141 = vld [vmem:[%s140] sm:$0x1]
    %s142 = sld [smem:[#allocation2 + $0xf]]
    %s143 = scalar_lea.vmem [#allocation8], %s142
    %v144 = vld [vmem:[%s143] sm:$0x1]
    %v146 = vrot.slane %v144, 7
    %v148 = vsel %vm77, %v141, %v146
    %s149 = sld [smem:[#allocation6]]
    %v150 = vstv %s149
    %s151 = sld [smem:[#allocation6 + $0x1]]
    %v152 = vstv %s151
    %v153 = vsel %vm77, %v150, %v152
    %vm154 = vcmask 261120
    %v156 = vsel %vm154, 0, 0
    %158 = vmatprep.subr.bf16.mxu0 0
    %159 = vmatpush1.bf16.msra.mxu0 %v59
    %160 = vmatprep.subr.bf16.mxu0 0
    %161 = vmatpush1.bf16.msra.mxu0 %v60
    %162 = vmatprep.subr.bf16.mxu0 0
    %163 = vmatpush1.bf16.msra.mxu0 0
    %164 = vmatprep.subr.bf16.mxu0 0
    %165 = vmatpush1.bf16.msra.mxu0 0
    %166 = vmatprep.subr.bf16.mxu0 0
    %167 = vmatpush1.bf16.msra.mxu0 0
    %168 = vmatprep.subr.bf16.mxu0 0
    %169 = vmatpush1.bf16.msra.mxu0 0
    %170 = vmatprep.subr.bf16.mxu0 0
    %171 = vmatpush1.bf16.msra.mxu0 0
    %172 = vmatprep.subr.bf16.mxu0 0
    %173 = vmatpush1.bf16.msra.mxu0 0
    %174 = vmatprep.subr.bf16.mxu0 0
    %175 = vmatpush1.bf16.msra.mxu0 0
    %176 = vmatprep.subr.bf16.mxu0 0
    %177 = vmatpush1.bf16.msra.mxu0 0
    %178 = vmatprep.subr.bf16.mxu0 0
    %179 = vmatpush1.bf16.msra.mxu0 0
    %180 = vmatprep.subr.bf16.mxu0 0
    %181 = vmatpush1.bf16.msra.mxu0 0
    %182 = vmatprep.subr.bf16.mxu0 0
    %183 = vmatpush1.bf16.msra.mxu0 0
    %184 = vmatprep.subr.bf16.mxu0 0
    %185 = vmatpush1.bf16.msra.mxu0 0
    %186 = vmatprep.subr.bf16.mxu0 0
    %187 = vmatpush1.bf16.msra.mxu0 0
    %188 = vmatprep.subr.bf16.mxu0 0
    %189 = vmatpush1.bf16.msra.mxu0 0
    %190 = vmatprep.mubr.bf16.mxu0 0
    %191 = vmatmul.mubr.bf16.gmra.mrb[0].mxu0 %v156
    %v192 = vpop.f32.mrb[0].mxu0
    %v193 = vadd.f32 0.0, %v192
    %v194 = vpop.f32.mrb[0].mxu0
    %v195 = vpop.f32.mrb[0].mxu0
    %v196 = vpop.f32.mrb[0].mxu0
    %197 = vdwg.mxu0
    %v198 = vadd.f32 %v78, %v193
    %v199 = vxor.u32 %v198, 2147483648
    %v200 = vmul.f32 %v199, 1.442695
    %v201 = vpow.pop %v200
    %v202 = vadd.f32 %v201, 1.0
    %v203 = vrcp.pop %v202
    %v204 = vmul.f32 1.0, %v203
    %v205 = vtanh.pop %v198
    %v206 = vmul.f32 %v204, 0.0
    %208 = vrot.lane.b32.xlu0 %v205, 64
    %v209 = vpop.permute.xlu0 %208
    %v211 = vmul.f32 %v204, %v209
    %213 = vrot.lane.b32.xlu0 %v211, 32
    %v214 = vpop.permute.xlu0 %213
    %v216 = vadd.f32 %v206, %v214
    %v217 = vtanh.pop %v216
    %219 = vrot.lane.b32.xlu0 %v217, 64
    %v220 = vpop.permute.xlu0 %219
    %v222 = vmul.f32 %v204, %v220
    %vm223 = vcmp.gt.s32.totalorder %v153, 0
    %225 = vrot.lane.b32.xlu0 %v222, 32
    %v226 = vpop.permute.xlu0 %225
    %v228 = vsel %vm223, %v226, 0.0
    %230 = vrot.lane.b32.xlu0 %v216, 96
    %v231 = vpop.permute.xlu0 %230
    %v233 = vsel %vm223, %v231, 0.0
    %v234 = vpack.c.bf16 %v228, %v228
    %v236 = vsel %vm154, %v234, 0
    %238 = vmatprep.subr.bf16.mxu0 0
    %239 = vmatpush1.bf16.msra.mxu0 %v59
    %240 = vmatprep.subr.bf16.mxu0 0
    %241 = vmatpush1.bf16.msra.mxu0 %v60
    %242 = vmatprep.subr.bf16.mxu0 0
    %243 = vmatpush1.bf16.msra.mxu0 0
    %244 = vmatprep.subr.bf16.mxu0 0
    %245 = vmatpush1.bf16.msra.mxu0 0
    %246 = vmatprep.subr.bf16.mxu0 0
    %247 = vmatpush1.bf16.msra.mxu0 0
    %248 = vmatprep.subr.bf16.mxu0 0
    %249 = vmatpush1.bf16.msra.mxu0 0
    %250 = vmatprep.subr.bf16.mxu0 0
    %251 = vmatpush1.bf16.msra.mxu0 0
    %252 = vmatprep.subr.bf16.mxu0 0
    %253 = vmatpush1.bf16.msra.mxu0 0
    %254 = vmatprep.subr.bf16.mxu0 0
    %255 = vmatpush1.bf16.msra.mxu0 0
    %256 = vmatprep.subr.bf16.mxu0 0
    %257 = vmatpush1.bf16.msra.mxu0 0
    %258 = vmatprep.subr.bf16.mxu0 0
    %259 = vmatpush1.bf16.msra.mxu0 0
    %260 = vmatprep.subr.bf16.mxu0 0
    %261 = vmatpush1.bf16.msra.mxu0 0
    %262 = vmatprep.subr.bf16.mxu0 0
    %263 = vmatpush1.bf16.msra.mxu0 0
    %264 = vmatprep.subr.bf16.mxu0 0
    %265 = vmatpush1.bf16.msra.mxu0 0
    %266 = vmatprep.subr.bf16.mxu0 0
    %267 = vmatpush1.bf16.msra.mxu0 0
    %268 = vmatprep.subr.bf16.mxu0 0
    %269 = vmatpush1.bf16.msra.mxu0 0
    %270 = vmatprep.mubr.bf16.mxu0 0
    %271 = vmatmul.mubr.bf16.gmra.mrb[0].mxu0 %v236
    %v272 = vpop.f32.mrb[0].mxu0
    %v273 = vadd.f32 0.0, %v272
    %v274 = vpop.f32.mrb[0].mxu0
    %v275 = vpop.f32.mrb[0].mxu0
    %v276 = vpop.f32.mrb[0].mxu0
    %277 = vdwg.mxu0
    %v278 = vadd.f32 %v88, %v273
    %v279 = vxor.u32 %v278, 2147483648
    %v280 = vmul.f32 %v279, 1.442695
    %v281 = vpow.pop %v280
    %v282 = vadd.f32 %v281, 1.0
    %v283 = vrcp.pop %v282
    %v284 = vmul.f32 1.0, %v283
    %v285 = vtanh.pop %v278
    %287 = vrot.lane.b32.xlu0 %v233, 32
    %v288 = vpop.permute.xlu0 %287
    %v290 = vmul.f32 %v284, %v288
    %292 = vrot.lane.b32.xlu0 %v285, 64
    %v293 = vpop.permute.xlu0 %292
    %v295 = vmul.f32 %v284, %v293
    %297 = vrot.lane.b32.xlu0 %v295, 32
    %v298 = vpop.permute.xlu0 %297
    %v300 = vadd.f32 %v290, %v298
    %v301 = vtanh.pop %v300
    %303 = vrot.lane.b32.xlu0 %v301, 64
    %v304 = vpop.permute.xlu0 %303
    %v306 = vmul.f32 %v284, %v304
    %vm307 = vcmp.gt.s32.totalorder %v153, 1
    %309 = vrot.lane.b32.xlu0 %v306, 32
    %v310 = vpop.permute.xlu0 %309
    %v312 = vsel %vm307, %v310, %v228
    %314 = vrot.lane.b32.xlu0 %v300, 96
    %v315 = vpop.permute.xlu0 %314
    %v317 = vsel %vm307, %v315, %v233
    %v318 = vpack.c.bf16 %v312, %v312
    %v320 = vsel %vm154, %v318, 0
    %322 = vmatprep.subr.bf16.mxu0 0
    %323 = vmatpush1.bf16.msra.mxu0 %v59
    %324 = vmatprep.subr.bf16.mxu0 0
    %325 = vmatpush1.bf16.msra.mxu0 %v60
    %326 = vmatprep.subr.bf16.mxu0 0
    %327 = vmatpush1.bf16.msra.mxu0 0
    %328 = vmatprep.subr.bf16.mxu0 0
    %329 = vmatpush1.bf16.msra.mxu0 0
    %330 = vmatprep.subr.bf16.mxu0 0
    %331 = vmatpush1.bf16.msra.mxu0 0
    %332 = vmatprep.subr.bf16.mxu0 0
    %333 = vmatpush1.bf16.msra.mxu0 0
    %334 = vmatprep.subr.bf16.mxu0 0
    %335 = vmatpush1.bf16.msra.mxu0 0
    %336 = vmatprep.subr.bf16.mxu0 0
    %337 = vmatpush1.bf16.msra.mxu0 0
    %338 = vmatprep.subr.bf16.mxu0 0
    %339 = vmatpush1.bf16.msra.mxu0 0
    %340 = vmatprep.subr.bf16.mxu0 0
    %341 = vmatpush1.bf16.msra.mxu0 0
    %342 = vmatprep.subr.bf16.mxu0 0
    %343 = vmatpush1.bf16.msra.mxu0 0
    %344 = vmatprep.subr.bf16.mxu0 0
    %345 = vmatpush1.bf16.msra.mxu0 0
    %346 = vmatprep.subr.bf16.mxu0 0
    %347 = vmatpush1.bf16.msra.mxu0 0
    %348 = vmatprep.subr.bf16.mxu0 0
    %349 = vmatpush1.bf16.msra.mxu0 0
    %350 = vmatprep.subr.bf16.mxu0 0
    %351 = vmatpush1.bf16.msra.mxu0 0
    %352 = vmatprep.subr.bf16.mxu0 0
    %353 = vmatpush1.bf16.msra.mxu0 0
    %354 = vmatprep.mubr.bf16.mxu0 0
    %355 = vmatmul.mubr.bf16.gmra.mrb[0].mxu0 %v320
    %v356 = vpop.f32.mrb[0].mxu0
    %v357 = vadd.f32 0.0, %v356
    %v358 = vpop.f32.mrb[0].mxu0
    %v359 = vpop.f32.mrb[0].mxu0
    %v360 = vpop.f32.mrb[0].mxu0
    %361 = vdwg.mxu0
    %v362 = vadd.f32 %v98, %v357
    %v363 = vxor.u32 %v362, 2147483648
    %v364 = vmul.f32 %v363, 1.442695
    %v365 = vpow.pop %v364
    %v366 = vadd.f32 %v365, 1.0
    %v367 = vrcp.pop %v366
    %v368 = vmul.f32 1.0, %v367
    %v369 = vtanh.pop %v362
    %371 = vrot.lane.b32.xlu0 %v317, 32
    %v372 = vpop.permute.xlu0 %371
    %v374 = vmul.f32 %v368, %v372
    %376 = vrot.lane.b32.xlu0 %v369, 64
    %v377 = vpop.permute.xlu0 %376
    %v379 = vmul.f32 %v368, %v377
    %381 = vrot.lane.b32.xlu0 %v379, 32
    %v382 = vpop.permute.xlu0 %381
    %v384 = vadd.f32 %v374, %v382
    %v385 = vtanh.pop %v384
    %387 = vrot.lane.b32.xlu0 %v385, 64
    %v388 = vpop.permute.xlu0 %387
    %v390 = vmul.f32 %v368, %v388
    %vm391 = vcmp.gt.s32.totalorder %v153, 2
    %393 = vrot.lane.b32.xlu0 %v390, 32
    %v394 = vpop.permute.xlu0 %393
    %v396 = vsel %vm391, %v394, %v312
    %398 = vrot.lane.b32.xlu0 %v384, 96
    %v399 = vpop.permute.xlu0 %398
    %v401 = vsel %vm391, %v399, %v317
    %v402 = vpack.c.bf16 %v396, %v396
    %v404 = vsel %vm154, %v402, 0
    %406 = vmatprep.subr.bf16.mxu0 0
    %407 = vmatpush1.bf16.msra.mxu0 %v59
    %408 = vmatprep.subr.bf16.mxu0 0
    %409 = vmatpush1.bf16.msra.mxu0 %v60
    %410 = vmatprep.subr.bf16.mxu0 0
    %411 = vmatpush1.bf16.msra.mxu0 0
    %412 = vmatprep.subr.bf16.mxu0 0
    %413 = vmatpush1.bf16.msra.mxu0 0
    %414 = vmatprep.subr.bf16.mxu0 0
    %415 = vmatpush1.bf16.msra.mxu0 0
    %416 = vmatprep.subr.bf16.mxu0 0
    %417 = vmatpush1.bf16.msra.mxu0 0
    %418 = vmatprep.subr.bf16.mxu0 0
    %419 = vmatpush1.bf16.msra.mxu0 0
    %420 = vmatprep.subr.bf16.mxu0 0
    %421 = vmatpush1.bf16.msra.mxu0 0
    %422 = vmatprep.subr.bf16.mxu0 0
    %423 = vmatpush1.bf16.msra.mxu0 0
    %424 = vmatprep.subr.bf16.mxu0 0
    %425 = vmatpush1.bf16.msra.mxu0 0
    %426 = vmatprep.subr.bf16.mxu0 0
    %427 = vmatpush1.bf16.msra.mxu0 0
    %428 = vmatprep.subr.bf16.mxu0 0
    %429 = vmatpush1.bf16.msra.mxu0 0
    %430 = vmatprep.subr.bf16.mxu0 0
    %431 = vmatpush1.bf16.msra.mxu0 0
    %432 = vmatprep.subr.bf16.mxu0 0
    %433 = vmatpush1.bf16.msra.mxu0 0
    %434 = vmatprep.subr.bf16.mxu0 0
    %435 = vmatpush1.bf16.msra.mxu0 0
    %436 = vmatprep.subr.bf16.mxu0 0
    %437 = vmatpush1.bf16.msra.mxu0 0
    %438 = vmatprep.mubr.bf16.mxu0 0
    %439 = vmatmul.mubr.bf16.gmra.mrb[0].mxu0 %v404
    %v440 = vpop.f32.mrb[0].mxu0
    %v441 = vadd.f32 0.0, %v440
    %v442 = vpop.f32.mrb[0].mxu0
    %v443 = vpop.f32.mrb[0].mxu0
    %v444 = vpop.f32.mrb[0].mxu0
    %445 = vdwg.mxu0
    %v446 = vadd.f32 %v108, %v441
    %v447 = vxor.u32 %v446, 2147483648
    %v448 = vmul.f32 %v447, 1.442695
    %v449 = vpow.pop %v448
    %v450 = vadd.f32 %v449, 1.0
    %v451 = vrcp.pop %v450
    %v452 = vmul.f32 1.0, %v451
    %v453 = vtanh.pop %v446
    %455 = vrot.lane.b32.xlu0 %v401, 32
    %v456 = vpop.permute.xlu0 %455
    %v458 = vmul.f32 %v452, %v456
    %460 = vrot.lane.b32.xlu0 %v453, 64
    %v461 = vpop.permute.xlu0 %460
    %v463 = vmul.f32 %v452, %v461
    %465 = vrot.lane.b32.xlu0 %v463, 32
    %v466 = vpop.permute.xlu0 %465
    %v468 = vadd.f32 %v458, %v466
    %v469 = vtanh.pop %v468
    %471 = vrot.lane.b32.xlu0 %v469, 64
    %v472 = vpop.permute.xlu0 %471
    %v474 = vmul.f32 %v452, %v472
    %vm475 = vcmp.gt.s32.totalorder %v153, 3
    %477 = vrot.lane.b32.xlu0 %v474, 32
    %v478 = vpop.permute.xlu0 %477
    %v480 = vsel %vm475, %v478, %v396
    %482 = vrot.lane.b32.xlu0 %v468, 96
    %v483 = vpop.permute.xlu0 %482
    %v485 = vsel %vm475, %v483, %v401
    %v486 = vpack.c.bf16 %v480, %v480
    %v488 = vsel %vm154, %v486, 0
    %490 = vmatprep.subr.bf16.mxu0 0
    %491 = vmatpush1.bf16.msra.mxu0 %v59
    %492 = vmatprep.subr.bf16.mxu0 0
    %493 = vmatpush1.bf16.msra.mxu0 %v60
    %494 = vmatprep.subr.bf16.mxu0 0
    %495 = vmatpush1.bf16.msra.mxu0 0
    %496 = vmatprep.subr.bf16.mxu0 0
    %497 = vmatpush1.bf16.msra.mxu0 0
    %498 = vmatprep.subr.bf16.mxu0 0
    %499 = vmatpush1.bf16.msra.mxu0 0
    %500 = vmatprep.subr.bf16.mxu0 0
    %501 = vmatpush1.bf16.msra.mxu0 0
    %502 = vmatprep.subr.bf16.mxu0 0
    %503 = vmatpush1.bf16.msra.mxu0 0
    %504 = vmatprep.subr.bf16.mxu0 0
    %505 = vmatpush1.bf16.msra.mxu0 0
    %506 = vmatprep.subr.bf16.mxu0 0
    %507 = vmatpush1.bf16.msra.mxu0 0
    %508 = vmatprep.subr.bf16.mxu0 0
    %509 = vmatpush1.bf16.msra.mxu0 0
    %510 = vmatprep.subr.bf16.mxu0 0
    %511 = vmatpush1.bf16.msra.mxu0 0
    %512 = vmatprep.subr.bf16.mxu0 0
    %513 = vmatpush1.bf16.msra.mxu0 0
    %514 = vmatprep.subr.bf16.mxu0 0
    %515 = vmatpush1.bf16.msra.mxu0 0
    %516 = vmatprep.subr.bf16.mxu0 0
    %517 = vmatpush1.bf16.msra.mxu0 0
    %518 = vmatprep.subr.bf16.mxu0 0
    %519 = vmatpush1.bf16.msra.mxu0 0
    %520 = vmatprep.subr.bf16.mxu0 0
    %521 = vmatpush1.bf16.msra.mxu0 0
    %522 = vmatprep.mubr.bf16.mxu0 0
    %523 = vmatmul.mubr.bf16.gmra.mrb[0].mxu0 %v488
    %v524 = vpop.f32.mrb[0].mxu0
    %v525 = vadd.f32 0.0, %v524
    %v526 = vpop.f32.mrb[0].mxu0
    %v527 = vpop.f32.mrb[0].mxu0
    %v528 = vpop.f32.mrb[0].mxu0
    %529 = vdwg.mxu0
    %v530 = vadd.f32 %v118, %v525
    %v531 = vxor.u32 %v530, 2147483648
    %v532 = vmul.f32 %v531, 1.442695
    %v533 = vpow.pop %v532
    %v534 = vadd.f32 %v533, 1.0
    %v535 = vrcp.pop %v534
    %v536 = vmul.f32 1.0, %v535
    %v537 = vtanh.pop %v530
    %539 = vrot.lane.b32.xlu0 %v485, 32
    %v540 = vpop.permute.xlu0 %539
    %v542 = vmul.f32 %v536, %v540
    %544 = vrot.lane.b32.xlu0 %v537, 64
    %v545 = vpop.permute.xlu0 %544
    %v547 = vmul.f32 %v536, %v545
    %549 = vrot.lane.b32.xlu0 %v547, 32
    %v550 = vpop.permute.xlu0 %549
    %v552 = vadd.f32 %v542, %v550
    %v553 = vtanh.pop %v552
    %555 = vrot.lane.b32.xlu0 %v553, 64
    %v556 = vpop.permute.xlu0 %555
    %v558 = vmul.f32 %v536, %v556
    %vm559 = vcmp.gt.s32.totalorder %v153, 4
    %561 = vrot.lane.b32.xlu0 %v558, 32
    %v562 = vpop.permute.xlu0 %561
    %v564 = vsel %vm559, %v562, %v480
    %566 = vrot.lane.b32.xlu0 %v552, 96
    %v567 = vpop.permute.xlu0 %566
    %v569 = vsel %vm559, %v567, %v485
    %v570 = vpack.c.bf16 %v564, %v564
    %v572 = vsel %vm154, %v570, 0
    %574 = vmatprep.subr.bf16.mxu0 0
    %575 = vmatpush1.bf16.msra.mxu0 %v59
    %576 = vmatprep.subr.bf16.mxu0 0
    %577 = vmatpush1.bf16.msra.mxu0 %v60
    %578 = vmatprep.subr.bf16.mxu0 0
    %579 = vmatpush1.bf16.msra.mxu0 0
    %580 = vmatprep.subr.bf16.mxu0 0
    %581 = vmatpush1.bf16.msra.mxu0 0
    %582 = vmatprep.subr.bf16.mxu0 0
    %583 = vmatpush1.bf16.msra.mxu0 0
    %584 = vmatprep.subr.bf16.mxu0 0
    %585 = vmatpush1.bf16.msra.mxu0 0
    %586 = vmatprep.subr.bf16.mxu0 0
    %587 = vmatpush1.bf16.msra.mxu0 0
    %588 = vmatprep.subr.bf16.mxu0 0
    %589 = vmatpush1.bf16.msra.mxu0 0
    %590 = vmatprep.subr.bf16.mxu0 0
    %591 = vmatpush1.bf16.msra.mxu0 0
    %592 = vmatprep.subr.bf16.mxu0 0
    %593 = vmatpush1.bf16.msra.mxu0 0
    %594 = vmatprep.subr.bf16.mxu0 0
    %595 = vmatpush1.bf16.msra.mxu0 0
    %596 = vmatprep.subr.bf16.mxu0 0
    %597 = vmatpush1.bf16.msra.mxu0 0
    %598 = vmatprep.subr.bf16.mxu0 0
    %599 = vmatpush1.bf16.msra.mxu0 0
    %600 = vmatprep.subr.bf16.mxu0 0
    %601 = vmatpush1.bf16.msra.mxu0 0
    %602 = vmatprep.subr.bf16.mxu0 0
    %603 = vmatpush1.bf16.msra.mxu0 0
    %604 = vmatprep.subr.bf16.mxu0 0
    %605 = vmatpush1.bf16.msra.mxu0 0
    %606 = vmatprep.mubr.bf16.mxu0 0
    %607 = vmatmul.mubr.bf16.gmra.mrb[0].mxu0 %v572
    %v608 = vpop.f32.mrb[0].mxu0
    %v609 = vadd.f32 0.0, %v608
    %v610 = vpop.f32.mrb[0].mxu0
    %v611 = vpop.f32.mrb[0].mxu0
    %v612 = vpop.f32.mrb[0].mxu0
    %613 = vdwg.mxu0
    %v614 = vadd.f32 %v128, %v609
    %v615 = vxor.u32 %v614, 2147483648
    %v616 = vmul.f32 %v615, 1.442695
    %v617 = vpow.pop %v616
    %v618 = vadd.f32 %v617, 1.0
    %v619 = vrcp.pop %v618
    %v620 = vmul.f32 1.0, %v619
    %v621 = vtanh.pop %v614
    %623 = vrot.lane.b32.xlu0 %v569, 32
    %v624 = vpop.permute.xlu0 %623
    %v626 = vmul.f32 %v620, %v624
    %628 = vrot.lane.b32.xlu0 %v621, 64
    %v629 = vpop.permute.xlu0 %628
    %v631 = vmul.f32 %v620, %v629
    %633 = vrot.lane.b32.xlu0 %v631, 32
    %v634 = vpop.permute.xlu0 %633
    %v636 = vadd.f32 %v626, %v634
    %v637 = vtanh.pop %v636
    %639 = vrot.lane.b32.xlu0 %v637, 64
    %v640 = vpop.permute.xlu0 %639
    %v642 = vmul.f32 %v620, %v640
    %vm643 = vcmp.gt.s32.totalorder %v153, 5
    %645 = vrot.lane.b32.xlu0 %v642, 32
    %v646 = vpop.permute.xlu0 %645
    %v648 = vsel %vm643, %v646, %v564
    %650 = vrot.lane.b32.xlu0 %v636, 96
    %v651 = vpop.permute.xlu0 %650
    %v653 = vsel %vm643, %v651, %v569
    %v654 = vpack.c.bf16 %v648, %v648
    %v656 = vsel %vm154, %v654, 0
    %658 = vmatprep.subr.bf16.mxu0 0
    %659 = vmatpush1.bf16.msra.mxu0 %v59
    %660 = vmatprep.subr.bf16.mxu0 0
    %661 = vmatpush1.bf16.msra.mxu0 %v60
    %662 = vmatprep.subr.bf16.mxu0 0
    %663 = vmatpush1.bf16.msra.mxu0 0
    %664 = vmatprep.subr.bf16.mxu0 0
    %665 = vmatpush1.bf16.msra.mxu0 0
    %666 = vmatprep.subr.bf16.mxu0 0
    %667 = vmatpush1.bf16.msra.mxu0 0
    %668 = vmatprep.subr.bf16.mxu0 0
    %669 = vmatpush1.bf16.msra.mxu0 0
    %670 = vmatprep.subr.bf16.mxu0 0
    %671 = vmatpush1.bf16.msra.mxu0 0
    %672 = vmatprep.subr.bf16.mxu0 0
    %673 = vmatpush1.bf16.msra.mxu0 0
    %674 = vmatprep.subr.bf16.mxu0 0
    %675 = vmatpush1.bf16.msra.mxu0 0
    %676 = vmatprep.subr.bf16.mxu0 0
    %677 = vmatpush1.bf16.msra.mxu0 0
    %678 = vmatprep.subr.bf16.mxu0 0
    %679 = vmatpush1.bf16.msra.mxu0 0
    %680 = vmatprep.subr.bf16.mxu0 0
    %681 = vmatpush1.bf16.msra.mxu0 0
    %682 = vmatprep.subr.bf16.mxu0 0
    %683 = vmatpush1.bf16.msra.mxu0 0
    %684 = vmatprep.subr.bf16.mxu0 0
    %685 = vmatpush1.bf16.msra.mxu0 0
    %686 = vmatprep.subr.bf16.mxu0 0
    %687 = vmatpush1.bf16.msra.mxu0 0
    %688 = vmatprep.subr.bf16.mxu0 0
    %689 = vmatpush1.bf16.msra.mxu0 0
    %690 = vmatprep.mubr.bf16.mxu0 0
    %691 = vmatmul.mubr.bf16.gmra.mrb[0].mxu0 %v656
    %v692 = vpop.f32.mrb[0].mxu0
    %v693 = vadd.f32 0.0, %v692
    %v694 = vpop.f32.mrb[0].mxu0
    %v695 = vpop.f32.mrb[0].mxu0
    %v696 = vpop.f32.mrb[0].mxu0
    %697 = vdwg.mxu0
    %v698 = vadd.f32 %v138, %v693
    %v699 = vxor.u32 %v698, 2147483648
    %v700 = vmul.f32 %v699, 1.442695
    %v701 = vpow.pop %v700
    %v702 = vadd.f32 %v701, 1.0
    %v703 = vrcp.pop %v702
    %v704 = vmul.f32 1.0, %v703
    %v705 = vtanh.pop %v698
    %707 = vrot.lane.b32.xlu0 %v653, 32
    %v708 = vpop.permute.xlu0 %707
    %v710 = vmul.f32 %v704, %v708
    %712 = vrot.lane.b32.xlu0 %v705, 64
    %v713 = vpop.permute.xlu0 %712
    %v715 = vmul.f32 %v704, %v713
    %717 = vrot.lane.b32.xlu0 %v715, 32
    %v718 = vpop.permute.xlu0 %717
    %v720 = vadd.f32 %v710, %v718
    %v721 = vtanh.pop %v720
    %723 = vrot.lane.b32.xlu0 %v721, 64
    %v724 = vpop.permute.xlu0 %723
    %v726 = vmul.f32 %v704, %v724
    %vm727 = vcmp.gt.s32.totalorder %v153, 6
    %729 = vrot.lane.b32.xlu0 %v726, 32
    %v730 = vpop.permute.xlu0 %729
    %v732 = vsel %vm727, %v730, %v648
    %734 = vrot.lane.b32.xlu0 %v720, 96
    %v735 = vpop.permute.xlu0 %734
    %v737 = vsel %vm727, %v735, %v653
    %v738 = vpack.c.bf16 %v732, %v732
    %v740 = vsel %vm154, %v738, 0
    %742 = vmatprep.subr.bf16.mxu0 0
    %743 = vmatpush1.bf16.msra.mxu0 %v59
    %744 = vmatprep.subr.bf16.mxu0 0
    %745 = vmatpush1.bf16.msra.mxu0 %v60
    %746 = vmatprep.subr.bf16.mxu0 0
    %747 = vmatpush1.bf16.msra.mxu0 0
    %748 = vmatprep.subr.bf16.mxu0 0
    %749 = vmatpush1.bf16.msra.mxu0 0
    %750 = vmatprep.subr.bf16.mxu0 0
    %751 = vmatpush1.bf16.msra.mxu0 0
    %752 = vmatprep.subr.bf16.mxu0 0
    %753 = vmatpush1.bf16.msra.mxu0 0
    %754 = vmatprep.subr.bf16.mxu0 0
    %755 = vmatpush1.bf16.msra.mxu0 0
    %756 = vmatprep.subr.bf16.mxu0 0
    %757 = vmatpush1.bf16.msra.mxu0 0
    %758 = vmatprep.subr.bf16.mxu0 0
    %759 = vmatpush1.bf16.msra.mxu0 0
    %760 = vmatprep.subr.bf16.mxu0 0
    %761 = vmatpush1.bf16.msra.mxu0 0
    %762 = vmatprep.subr.bf16.mxu0 0
    %763 = vmatpush1.bf16.msra.mxu0 0
    %764 = vmatprep.subr.bf16.mxu0 0
    %765 = vmatpush1.bf16.msra.mxu0 0
    %766 = vmatprep.subr.bf16.mxu0 0
    %767 = vmatpush1.bf16.msra.mxu0 0
    %768 = vmatprep.subr.bf16.mxu0 0
    %769 = vmatpush1.bf16.msra.mxu0 0
    %770 = vmatprep.subr.bf16.mxu0 0
    %771 = vmatpush1.bf16.msra.mxu0 0
    %772 = vmatprep.subr.bf16.mxu0 0
    %773 = vmatpush1.bf16.msra.mxu0 0
    %774 = vmatprep.mubr.bf16.mxu0 0
    %775 = vmatmul.mubr.bf16.gmra.mrb[0].mxu0 %v740
    %v776 = vpop.f32.mrb[0].mxu0
    %v777 = vadd.f32 0.0, %v776
    %v778 = vpop.f32.mrb[0].mxu0
    %v779 = vpop.f32.mrb[0].mxu0
    %v780 = vpop.f32.mrb[0].mxu0
    %781 = vdwg.mxu0
    %v782 = vadd.f32 %v148, %v777
    %v783 = vxor.u32 %v782, 2147483648
    %v784 = vmul.f32 %v783, 1.442695
    %v785 = vpow.pop %v784
    %v786 = vadd.f32 %v785, 1.0
    %v787 = vrcp.pop %v786
    %v788 = vmul.f32 1.0, %v787
    %v789 = vtanh.pop %v782
    %791 = vrot.lane.b32.xlu0 %v737, 32
    %v792 = vpop.permute.xlu0 %791
    %v794 = vmul.f32 %v788, %v792
    %796 = vrot.lane.b32.xlu0 %v789, 64
    %v797 = vpop.permute.xlu0 %796
    %v799 = vmul.f32 %v788, %v797
    %801 = vrot.lane.b32.xlu0 %v799, 32
    %v802 = vpop.permute.xlu0 %801
    %v804 = vadd.f32 %v794, %v802
    %v805 = vtanh.pop %v804
    %807 = vrot.lane.b32.xlu0 %v805, 64
    %v808 = vpop.permute.xlu0 %807
    %v810 = vmul.f32 %v788, %v808
    %vm811 = vcmp.gt.s32.totalorder %v153, 7
    %813 = vrot.lane.b32.xlu0 %v810, 32
    %v814 = vpop.permute.xlu0 %813
    %v816 = vsel %vm811, %v814, %v732
    %v817 = vpack.c.bf16 %v816, %v816
    %v818 = vlaneseq
    %v819 = vshrl.u32 %v818, 7
    %v820 = vsub.s32 0, %v819
    %v821 = vrot.slane %v67, %v820
    %v823 = vsel %vm154, %v817, 0
    %825 = vmatprep.subr.bf16.mxu0 0
    %826 = vmatpush1.bf16.msra.mxu0 %v65
    %827 = vmatprep.subr.bf16.mxu0 0
    %828 = vmatpush1.bf16.msra.mxu0 %v66
    %829 = vmatprep.subr.bf16.mxu0 0
    %830 = vmatpush1.bf16.msra.mxu0 0
    %831 = vmatprep.subr.bf16.mxu0 0
    %832 = vmatpush1.bf16.msra.mxu0 0
    %833 = vmatprep.subr.bf16.mxu0 0
    %834 = vmatpush1.bf16.msra.mxu0 0
    %835 = vmatprep.subr.bf16.mxu0 0
    %836 = vmatpush1.bf16.msra.mxu0 0
    %837 = vmatprep.subr.bf16.mxu0 0
    %838 = vmatpush1.bf16.msra.mxu0 0
    %839 = vmatprep.subr.bf16.mxu0 0
    %840 = vmatpush1.bf16.msra.mxu0 0
    %841 = vmatprep.subr.bf16.mxu0 0
    %842 = vmatpush1.bf16.msra.mxu0 0
    %843 = vmatprep.subr.bf16.mxu0 0
    %844 = vmatpush1.bf16.msra.mxu0 0
    %845 = vmatprep.subr.bf16.mxu0 0
    %846 = vmatpush1.bf16.msra.mxu0 0
    %847 = vmatprep.subr.bf16.mxu0 0
    %848 = vmatpush1.bf16.msra.mxu0 0
    %849 = vmatprep.subr.bf16.mxu0 0
    %850 = vmatpush1.bf16.msra.mxu0 0
    %851 = vmatprep.subr.bf16.mxu0 0
    %852 = vmatpush1.bf16.msra.mxu0 0
    %853 = vmatprep.subr.bf16.mxu0 0
    %854 = vmatpush1.bf16.msra.mxu0 0
    %855 = vmatprep.subr.bf16.mxu0 0
    %856 = vmatpush1.bf16.msra.mxu0 0
    %857 = vmatprep.mubr.bf16.mxu0 0
    %858 = vmatmul.mubr.bf16.gmra.mrb[0].mxu0 %v823
    %v859 = vpop.f32.mrb[0].mxu0
    %v860 = vadd.f32 %v821, %v859
    %v861 = vpop.f32.mrb[0].mxu0
    %v862 = vpop.f32.mrb[0].mxu0
    %v863 = vpop.f32.mrb[0].mxu0
    %864 = vdwg.mxu0
    %865 = vst [vmem:[#allocation9] sm:$0x3] %v860
    // Predicated region
    $region26: #{lstm_baseline_forward.1} parent=1 // pred_check
      _
    $region27: #{lstm_baseline_forward.1} parent=1 // pred_check_branch
      %867 = sbr.rel (0) target = $region29
    $region28: #{lstm_baseline_forward.1} parent=1 // pred_region
      %s869 = ssub.s32 32, 32
      %870 = vsyncadd [#allocation4], %s869
      %s872 = sshll.u32 [#allocation9], 4
      %s873 = int_to_ptr.vmem [resolvable:$true] %s872
      %875 = dma.vmem_to_hbm [thread:$0]  %s873, 32, %s3, [#allocation4]
    $region29: #{lstm_baseline_forward.1} parent=1 // pred_fallthru
      _
    // Predicated region
    $region30: #{lstm_baseline_forward.1} parent=1 // pred_check
      _
    $region31: #{lstm_baseline_forward.1} parent=1 // pred_check_branch
      %877 = sbr.rel (0) target = $region33
    $region32: #{lstm_baseline_forward.1} parent=1 // pred_region
      %878 = dma.done [#allocation4], 32
    $region33: #{lstm_baseline_forward.1} parent=1 // pred_fallthru
      _
    %879 = vsyncpa [#allocation3], 1
    %880 = vsyncpa [#allocation4], 1
    %881 = vsyncpa [#allocation5], 1
    %882 = vsyncpa [#allocation7], 1

</llo_original>
